<compile_context>
chip_gen: v5e
topology: v5e:2x2
jax: 0.10.0
libtpu: 0.0.40
codegen_flags: <defaults>
</compile_context>

<pallas_src>
import functools

import jax
import jax.numpy as jnp
from jax.experimental import pallas as pl
from jax.experimental.pallas import tpu as pltpu


def _focal_loss_kernel(logits_ref, target_ref, *rest, gamma, has_alpha,
                       accumulate):
    if has_alpha:
        alpha_ref, out_ref = rest
    else:
        alpha_ref = None
        (out_ref,) = rest

    logits = logits_ref[0].astype(jnp.float32)          # (C, S, 128)
    tgt = target_ref[0]                                  # (1, S, 128) int32

    # log-softmax over the class axis (leading dim -> VPU-only reductions).
    m = jnp.max(logits, axis=0, keepdims=True)           # (1, S, 128)
    shifted = logits - m                                  # (C, S, 128)
    lse = jnp.log(jnp.sum(jnp.exp(shifted), axis=0))      # (S, 128)

    # one-hot gather of the target class.
    cls = jax.lax.broadcasted_iota(jnp.int32, logits.shape, 0)   # (C, S, 128)
    mask = (cls == tgt).astype(jnp.float32)                      # (C, S, 128)
    shifted_t = jnp.sum(mask * shifted, axis=0)                  # (S, 128)

    log_p = shifted_t - lse                                      # (S, 128)
    p = jnp.exp(log_p)
    one_minus_p = 1.0 - p

    g = float(gamma)
    if g.is_integer() and g >= 0:
        # integer power -> pure VPU multiplies (no exp/log on the EUP).
        focal = jax.lax.integer_pow(one_minus_p, int(g))
    else:
        focal = jnp.power(one_minus_p, g)

    loss = -focal * log_p                                        # (S, 128)
    if has_alpha:
        alpha_fac = jnp.sum(mask * alpha_ref[...], axis=0)       # (S, 128)
        loss = alpha_fac * loss

    if accumulate:
        # per-batch lane-dense accumulator, resident across the inner axis.
        @pl.when(pl.program_id(1) == 0)
        def _init():
            out_ref[...] = jnp.zeros_like(out_ref)

        out_ref[0] += loss
    else:
        out_ref[0] = loss.astype(out_ref.dtype)


def _pick_spatial_tile(n_chunks, C, itemsize, vmem_budget_bytes):
    """Pick S (128-pixel sublane-chunks per tile) under a VMEM budget."""
    # per chunk: 2x double-buffered logits (native dtype) + ~6 f32 compute
    # temporaries of shape (C, 128).
    bytes_per_chunk = C * 128 * (2 * itemsize + 6 * 4)
    s_cap = int(max(1, min(256, vmem_budget_bytes // bytes_per_chunk)))
    if n_chunks <= s_cap:
        return n_chunks
    best, best8 = 1, 0
    for d in range(1, s_cap + 1):
        if n_chunks % d == 0:
            best = d
            if d % 8 == 0:
                best8 = d
    return best8 if best8 else best


def focal_loss_pallas(logits, target, alpha=None, gamma=3.0, reduction="mean",
                      vmem_budget_bytes=16 * 1024 * 1024):
    """logits: [B, C, H, W] float (any dtype); target: [B, H, W] int classes."""
    B, C, H, W = logits.shape
    HW = H * W
    assert HW % 128 == 0, "H*W must be a multiple of 128"
    n_chunks = HW // 128

    itemsize = jnp.dtype(logits.dtype).itemsize
    S = _pick_spatial_tile(n_chunks, C, itemsize, vmem_budget_bytes)

    # Native-dtype pass-through for logits (no wrapper f32 cast).
    logits_r = logits.reshape(B, C, n_chunks, 128)
    target_r = target.reshape(B, 1, n_chunks, 128).astype(jnp.int32)

    has_alpha = alpha is not None
    args = [logits_r, target_r]
    in_specs = [
        pl.BlockSpec((1, C, S, 128), lambda b, t: (b, 0, t, 0)),   # logits
        pl.BlockSpec((1, 1, S, 128), lambda b, t: (b, 0, t, 0)),   # target
    ]
    if has_alpha:
        a = jnp.asarray(alpha, jnp.float32).reshape(-1)
        if a.shape[0] == 1:
            a = jnp.broadcast_to(a, (C,))
        assert a.shape[0] == C, "alpha must be a scalar or length-C"
        alpha_arr = jnp.broadcast_to(a.reshape(C, 1, 1), (C, 1, 128))
        args.append(alpha_arr)
        in_specs.append(pl.BlockSpec((C, 1, 128), lambda b, t: (0, 0, 0)))

    accumulate = reduction in ("mean", "sum")
    if accumulate:
        # per-batch partial sums; final (tiny) reduce + divide in the wrapper.
        out_shape = jax.ShapeDtypeStruct((B, S, 128), jnp.float32)
        out_spec = pl.BlockSpec((1, S, 128), lambda b, t: (b, 0, 0))
        dims = ("parallel", "arbitrary")
    elif reduction == "none":
        out_shape = jax.ShapeDtypeStruct((B, n_chunks, 128), jnp.float32)
        out_spec = pl.BlockSpec((1, S, 128), lambda b, t: (b, t, 0))
        dims = ("parallel", "parallel")
    else:
        raise ValueError(f"unknown reduction {reduction!r}")

    kernel = functools.partial(_focal_loss_kernel, gamma=float(gamma),
                               has_alpha=has_alpha, accumulate=accumulate)

    out = pl.pallas_call(
        kernel,
        out_shape=out_shape,
        grid_spec=pltpu.PrefetchScalarGridSpec(
            num_scalar_prefetch=0,
            grid=(B, n_chunks // S),
            in_specs=in_specs,
            out_specs=out_spec,
        ),
        compiler_params=pltpu.CompilerParams(dimension_semantics=dims),
    )(*args)

    if reduction == "mean":
        return out.sum() / (B * HW)
    elif reduction == "sum":
        return out.sum()
    else:
        return out.reshape(B, H, W)


def focal_loss_ref(logits, target, alpha=None, gamma=3.0, reduction="mean"):
    log_probs = jax.nn.log_softmax(logits.astype(jnp.float32), axis=1)
    log_p = jnp.take_along_axis(log_probs, target[:, None, :, :], axis=1)[:, 0]
    p = jnp.exp(log_p)
    loss = -((1.0 - p) ** gamma) * log_p
    if alpha is not None:
        a = jnp.asarray(alpha, jnp.float32)
        loss = a[target] * loss
    if reduction == "mean":
        return loss.mean()
    if reduction == "sum":
        return loss.sum()
    return loss


if __name__ == "__main__":
    key = jax.random.PRNGKey(0)
    B, C, H, W = 2, 4, 16, 16
    k1, k2 = jax.random.split(key)
    logits = jax.random.normal(k1, (B, C, H, W), dtype=jnp.float32)
    target = jax.random.randint(k2, (B, H, W), 0, C, dtype=jnp.int32)

    # mean reduction, no alpha (default Focal_Loss config)
    loss = focal_loss_pallas(logits, target, alpha=None, gamma=3.0,
                             reduction="mean")
    jax.block_until_ready(loss)
    ref = focal_loss_ref(logits, target, gamma=3.0, reduction="mean")
    assert jnp.allclose(loss, ref, rtol=1e-5, atol=1e-6), (loss, ref)

    # per-class alpha + 'sum' reduction
    alpha = [0.25, 0.5, 0.75, 1.0]
    loss_a = focal_loss_pallas(logits, target, alpha=alpha, gamma=3.0,
                               reduction="sum")
    jax.block_until_ready(loss_a)
    ref_a = focal_loss_ref(logits, target, alpha=alpha, gamma=3.0,
                           reduction="sum")
    assert jnp.allclose(loss_a, ref_a, rtol=1e-5, atol=1e-5), (loss_a, ref_a)

    # 'none' reduction (per-pixel loss map) with a non-integer gamma
    loss_map = focal_loss_pallas(logits, target, gamma=2.5, reduction="none")
    jax.block_until_ready(loss_map)
    ref_map = focal_loss_ref(logits, target, gamma=2.5, reduction="none")
    assert jnp.allclose(loss_map, ref_map, rtol=1e-5, atol=1e-6)

    print("KERNEL_OK")
</pallas_src>

<mosaic_0001>
module attributes {stable_mosaic.version = 11 : i64} {
  func.func @_focal_loss_kernel(%arg0: i32, %arg1: i32, %arg2: memref<1x4x2x128xf32, #tpu.memory_space<vmem>>, %arg3: memref<1x1x2x128xi32, #tpu.memory_space<vmem>>, %arg4: memref<1x2x128xf32, #tpu.memory_space<vmem>>) attributes {dimension_semantics = [#tpu.dimension_semantics<parallel>, #tpu.dimension_semantics<arbitrary>], iteration_bounds = array<i64: 2, 1>, scalar_prefetch = 0 : i64, scratch_operands = 0 : i64, tpu.core_type = #tpu.core_type<tc>, window_params = [{transform_indices = @transform_0, window_bounds = array<i64: 1, 4, 2, 128>}, {transform_indices = @transform_1, window_bounds = array<i64: 1, 1, 2, 128>}, {transform_indices = @transform_2, window_bounds = array<i64: 1, 2, 128>}]} {
    %c0 = arith.constant 0 : index
    %c0_0 = arith.constant 0 : index
    %c0_1 = arith.constant 0 : index
    %c0_2 = arith.constant 0 : index
    %0 = vector.load %arg2[%c0, %c0_0, %c0_1, %c0_2] : memref<1x4x2x128xf32, #tpu.memory_space<vmem>>, vector<1x4x2x128xf32>
    %1 = vector.shape_cast %0 : vector<1x4x2x128xf32> to vector<4x2x128xf32>
    %c0_3 = arith.constant 0 : index
    %c0_4 = arith.constant 0 : index
    %c0_5 = arith.constant 0 : index
    %c0_6 = arith.constant 0 : index
    %2 = vector.load %arg3[%c0_3, %c0_4, %c0_5, %c0_6] : memref<1x1x2x128xi32, #tpu.memory_space<vmem>>, vector<1x1x2x128xi32>
    %3 = vector.shape_cast %2 : vector<1x1x2x128xi32> to vector<1x2x128xi32>
    %cst = arith.constant dense<0xFF800000> : vector<2x128xf32>
    %4 = vector.multi_reduction <maximumf>, %1, %cst [0] : vector<4x2x128xf32> to vector<2x128xf32>
    %5 = vector.shape_cast %4 : vector<2x128xf32> to vector<1x2x128xf32>
    %6 = vector.broadcast %5 : vector<1x2x128xf32> to vector<4x2x128xf32>
    %7 = arith.subf %1, %6 : vector<4x2x128xf32>
    %8 = math.exp %7 : vector<4x2x128xf32>
    %cst_7 = arith.constant dense<0.000000e+00> : vector<2x128xf32>
    %9 = vector.multi_reduction <add>, %8, %cst_7 [0] : vector<4x2x128xf32> to vector<2x128xf32>
    %10 = math.log %9 : vector<2x128xf32>
    %11 = tpu.iota {dimensions = array<i32: 0>} : vector<4x2x128xi32>
    %12 = vector.broadcast %3 : vector<1x2x128xi32> to vector<4x2x128xi32>
    %13 = arith.cmpi eq, %11, %12 : vector<4x2x128xi32>
    %14 = arith.extui %13 : vector<4x2x128xi1> to vector<4x2x128xi32>
    %15 = arith.sitofp %14 : vector<4x2x128xi32> to vector<4x2x128xf32>
    %16 = arith.mulf %15, %7 : vector<4x2x128xf32>
    %cst_8 = arith.constant dense<0.000000e+00> : vector<2x128xf32>
    %17 = vector.multi_reduction <add>, %16, %cst_8 [0] : vector<4x2x128xf32> to vector<2x128xf32>
    %18 = arith.subf %17, %10 : vector<2x128xf32>
    %19 = math.exp %18 : vector<2x128xf32>
    %cst_9 = arith.constant 1.000000e+00 : f32
    %20 = vector.broadcast %cst_9 : f32 to vector<2x128xf32>
    %21 = arith.subf %20, %19 : vector<2x128xf32>
    %22 = arith.mulf %21, %21 : vector<2x128xf32>
    %23 = arith.mulf %21, %22 : vector<2x128xf32>
    %cst_10 = arith.constant 0.000000e+00 : f32
    %24 = vector.broadcast %cst_10 : f32 to vector<2x128xf32>
    %25 = arith.subf %24, %23 : vector<2x128xf32>
    %26 = arith.mulf %25, %18 : vector<2x128xf32>
    %c0_i32 = arith.constant 0 : i32
    %27 = arith.cmpi eq, %arg1, %c0_i32 : i32
    %28 = arith.extui %27 : i1 to i32
    %c0_i32_11 = arith.constant 0 : i32
    %29 = arith.cmpi ne, %28, %c0_i32_11 : i32
    scf.if %29 {
      %cst_18 = arith.constant 0.000000e+00 : f32
      %36 = vector.broadcast %cst_18 : f32 to vector<1x2x128xf32>
      %c0_19 = arith.constant 0 : index
      %c0_20 = arith.constant 0 : index
      %c0_21 = arith.constant 0 : index
      %37 = vector.load %arg4[%c0_19, %c0_20, %c0_21] : memref<1x2x128xf32, #tpu.memory_space<vmem>>, vector<1x2x128xf32>
      tpu.vector_store %arg4[%c0_19, %c0_20, %c0_21], %36 {strides = array<i32>} : memref<1x2x128xf32, #tpu.memory_space<vmem>>, vector<1x2x128xf32>,
    } else {
    }
    %c0_12 = arith.constant 0 : index
    %c0_13 = arith.constant 0 : index
    %c0_14 = arith.constant 0 : index
    %30 = vector.load %arg4[%c0_12, %c0_13, %c0_14] : memref<1x2x128xf32, #tpu.memory_space<vmem>>, vector<1x2x128xf32>
    %31 = vector.shape_cast %30 : vector<1x2x128xf32> to vector<2x128xf32>
    %32 = arith.addf %31, %26 : vector<2x128xf32>
    %c0_15 = arith.constant 0 : index
    %c0_16 = arith.constant 0 : index
    %c0_17 = arith.constant 0 : index
    %33 = vector.load %arg4[%c0_15, %c0_16, %c0_17] : memref<1x2x128xf32, #tpu.memory_space<vmem>>, vector<1x2x128xf32>
    %34 = vector.shape_cast %33 : vector<1x2x128xf32> to vector<2x128xf32>
    %35 = vector.shape_cast %32 : vector<2x128xf32> to vector<1x2x128xf32>
    tpu.vector_store %arg4[%c0_15, %c0_16, %c0_17], %35 {strides = array<i32>} : memref<1x2x128xf32, #tpu.memory_space<vmem>>, vector<1x2x128xf32>,
    return
  }
  func.func @transform_0(%arg0: i32, %arg1: i32) -> (i32, i32, i32, i32) {
    %c0_i32 = arith.constant 0 : i32
    %c0_i32_0 = arith.constant 0 : i32
    %c0_i32_1 = arith.constant 0 : i32
    return %arg0, %c0_i32, %arg1, %c0_i32_0 : i32, i32, i32, i32
  }
  func.func @transform_1(%arg0: i32, %arg1: i32) -> (i32, i32, i32, i32) {
    %c0_i32 = arith.constant 0 : i32
    %c0_i32_0 = arith.constant 0 : i32
    %c0_i32_1 = arith.constant 0 : i32
    return %arg0, %c0_i32, %arg1, %c0_i32_0 : i32, i32, i32, i32
  }
  func.func @transform_2(%arg0: i32, %arg1: i32) -> (i32, i32, i32) {
    %c0_i32 = arith.constant 0 : i32
    %c0_i32_0 = arith.constant 0 : i32
    %c0_i32_1 = arith.constant 0 : i32
    return %arg0, %c0_i32, %c0_i32_0 : i32, i32, i32
  }
}

</mosaic_0001>

<llo_original>
// kernel: tpu_custom_call.1
$region0: #{tpu_custom_call.1}
  #allocation0 [shape = 'u32[]', space=smem, size = 0x4, offset = 0x4, fixed_abs, tag = 'smem constant byte address 0x4 - core index']
  #allocation1 [shape = 'u32[72,128]{1,0:T(1,128)}', space=vmem, size = 0x9000, scoped, tag = 'internal scratch']
  %s0 = inlined_call_operand.hbm [shape: f32[2,4,2,128], index: 0, kind: input, shape index: {}]
  %s1 = inlined_call_operand.hbm [shape: s32[2,1,2,128], index: 1, kind: input, shape index: {}]
  %s2 = inlined_call_operand.hbm [shape: f32[2,2,128], index: 2, kind: output, shape index: {}]
  %s3 = sld [smem:[#allocation0]]
  $region53: #{tpu_custom_call.1} parent=0
    _
  %s5 = ssub.s32 1, %s3
  %s6 = scalar_select 0, %s5, %s3
  $region1: #{tpu_custom_call.1} parent=0
    #allocation2 [shape = 'u8[8192]{0}', space=vmem, size = 0x2000, scoped, tag = 'input window, operand 0']
    #allocation3 [shape = 's32[2]{0}', space=sflag, size = 0x8, scoped, tag = 'scoped memory for tpu_custom_call.1']
    #allocation4 [shape = 's32[2]{0}', space=sflag, size = 0x8, scoped, tag = 'scoped memory for tpu_custom_call.1']
    #allocation5 [shape = 'u8[2048]{0}', space=vmem, size = 0x800, scoped, tag = 'input window, operand 1']
    #allocation6 [shape = 's32[2]{0}', space=sflag, size = 0x8, scoped, tag = 'scoped memory for tpu_custom_call.1']
    #allocation7 [shape = 'u8[2048]{0}', space=vmem, size = 0x800, scoped, tag = 'output window, operand 0']
    %7 = vsyncpa [#allocation3], 0
    %s8 = scalar_lea.sflag [#allocation3], 1
    %9 = vsyncpa %s8, 0
    %10 = vsyncpa [#allocation6], 0
    %s11 = scalar_lea.sflag [#allocation6], 1
    %12 = vsyncpa %s11, 0
    %13 = vsyncpa [#allocation4], 0
    %s14 = scalar_lea.sflag [#allocation4], 1
    %15 = vsyncpa %s14, 0
    loop: start=0, step=1, limit=4
    $region2: #{tpu_custom_call.1} parent=1 // loop_pre_header
      _
    $region3: #{tpu_custom_call.1} parent=1 // loop_header
      %s17 = sphi 0, %s21
      %p18 = scmp.ge.s32.totalorder %s17, 4
      %s24 = sphi 0, %s36
      %s25 = sphi 0, %s32
      %s26 = sphi 0, %s24
      %s27 = sphi 0, %s25
      %s28 = sphi 0, %s26
      %s29 = sphi 0, %s27
      %s41 = sphi 0, %s43
      %s44 = sphi 0, %s41
      %s45 = sphi 0, %s44
      %s61 = sphi 0, %s45
      %s69 = sphi 0, %s71
      %s72 = sphi 0, %s69
      %s73 = sphi 0, %s72
      %s89 = sphi 0, %s73
      %s95 = sphi 0, %s97
      %s98 = sphi 0, %s95
      %s99 = sphi 0, %s98
      %s115 = sphi 0, %s99
    $region4: #{tpu_custom_call.1} parent=1 // loop_header_branch
      %20 = sbr.rel (%p18) target = $region8
    $region5: #{tpu_custom_call.1} parent=1 // loop_body
      %s22 = ssub.s32 %s17, 1
      %s23 = ssub.s32 %s17, 2
      %s30 = sadd.s32 1, %s25
      %p31 = scmp.ge.s32.totalorder %s30, 1
      %s32 = scalar_select %p31, 0, %s30
      %s33 = sadd.s32 1, %s24
      %s34 = scalar_select %p31, %s33, %s24
      %p35 = scmp.ge.s32.totalorder %s34, 2
      %s36 = scalar_select %p35, 0, %s34
      %s37 = ssub.s32 %s24, %s36
      %s38 = ssub.s32 %s25, %s32
      %s39 = sor.u32 %s37, %s38
      %p40 = scmp.eq.s32.totalorder %s39, 0
      %s42 = sadd.s32 %s41, 1
      %s43 = scalar_select %p40, %s41, %s42
      %p46 = pneg %p40
      %p47 = scmp.eq.s32.totalorder %s17, 1
      %p48 = por %p46, %p47
      %p49 = scmp.ne.s32.totalorder %s41, %s44
      %p50 = scmp.eq.s32.totalorder %s17, 0
      %p51 = por %p49, %p50
      %p52 = scmp.ne.s32.totalorder %s41, %s44
      %p53 = scmp.eq.s32.totalorder %s22, 1
      %p54 = por %p52, %p53
      %p55 = scmp.ne.s32.totalorder %s44, %s45
      %p56 = scmp.eq.s32.totalorder %s22, 0
      %p57 = por %p55, %p56
      %p58 = scmp.ne.s32.totalorder %s44, %s45
      %p59 = scmp.eq.s32.totalorder %s23, 1
      %p60 = por %p58, %p59
      %p62 = scmp.ne.s32.totalorder %s45, %s61
      %p63 = scmp.eq.s32.totalorder %s23, 0
      %p64 = por %p62, %p63
      %s65 = ssub.s32 %s24, %s36
      %s66 = ssub.s32 %s25, %s32
      %s67 = sor.u32 %s65, %s66
      %p68 = scmp.eq.s32.totalorder %s67, 0
      %s70 = sadd.s32 %s69, 1
      %s71 = scalar_select %p68, %s69, %s70
      %p74 = pneg %p68
      %p75 = scmp.eq.s32.totalorder %s17, 1
      %p76 = por %p74, %p75
      %p77 = scmp.ne.s32.totalorder %s69, %s72
      %p78 = scmp.eq.s32.totalorder %s17, 0
      %p79 = por %p77, %p78
      %p80 = scmp.ne.s32.totalorder %s69, %s72
      %p81 = scmp.eq.s32.totalorder %s22, 1
      %p82 = por %p80, %p81
      %p83 = scmp.ne.s32.totalorder %s72, %s73
      %p84 = scmp.eq.s32.totalorder %s22, 0
      %p85 = por %p83, %p84
      %p86 = scmp.ne.s32.totalorder %s72, %s73
      %p87 = scmp.eq.s32.totalorder %s23, 1
      %p88 = por %p86, %p87
      %p90 = scmp.ne.s32.totalorder %s73, %s89
      %p91 = scmp.eq.s32.totalorder %s23, 0
      %p92 = por %p90, %p91
      %s93 = ssub.s32 %s24, %s36
      %p94 = scmp.eq.s32.totalorder %s93, 0
      %s96 = sadd.s32 %s95, 1
      %s97 = scalar_select %p94, %s95, %s96
      %p100 = pneg %p94
      %p101 = scmp.eq.s32.totalorder %s17, 1
      %p102 = por %p100, %p101
      %p103 = scmp.ne.s32.totalorder %s95, %s98
      %p104 = scmp.eq.s32.totalorder %s17, 0
      %p105 = por %p103, %p104
      %p106 = scmp.ne.s32.totalorder %s95, %s98
      %p107 = scmp.eq.s32.totalorder %s22, 1
      %p108 = por %p106, %p107
      %p109 = scmp.ne.s32.totalorder %s98, %s99
      %p110 = scmp.eq.s32.totalorder %s22, 0
      %p111 = por %p109, %p110
      %p112 = scmp.ne.s32.totalorder %s98, %s99
      %p113 = scmp.eq.s32.totalorder %s23, 1
      %p114 = por %p112, %p113
      %p116 = scmp.ne.s32.totalorder %s99, %s115
      %p117 = scmp.eq.s32.totalorder %s23, 0
      %p118 = por %p116, %p117
      %p119 = scmp.le.s32.totalorder 1, %s17
      %p120 = scmp.lt.s32.totalorder %s17, 3
      %p121 = pnand %p119, %p120
      %p122 = pneg %p121
      // Predicated region
      $region9: #{tpu_custom_call.1} parent=5 // pred_check
        _
      $region10: #{tpu_custom_call.1} parent=5 // pred_check_branch
        %124 = sbr.rel (%p121) target = $region12
      $region11: #{tpu_custom_call.1} parent=5 // pred_region
        %s125 = ssub.s32 %s17, 1
      $region12: #{tpu_custom_call.1} parent=5 // pred_fallthru
        _
      %p126 = scmp.lt.s32.totalorder %s17, 2
      // Predicated region
      $region13: #{tpu_custom_call.1} parent=5 // pred_check
        %p127 = pneg %p126
      $region14: #{tpu_custom_call.1} parent=5 // pred_check_branch
        %129 = sbr.rel (%p127) target = $region16
      $region15: #{tpu_custom_call.1} parent=5 // pred_region
        // Predicated region
        $region17: #{tpu_custom_call.1} parent=15 // pred_check
          %p130 = pneg %p51
        $region18: #{tpu_custom_call.1} parent=15 // pred_check_branch
          %132 = sbr.rel (%p130) target = $region20
        $region19: #{tpu_custom_call.1} parent=15 // pred_region
          %s133 = sand.u32 %s41, 1
          %s134 = scalar_lea.sflag [#allocation3], %s133
          %s135 = sand.u32 %s41, 1
          %s136 = smul.addr %s135, 8
          %s137 = scalar_lea.vmem [#allocation2], %s136
          %139 = vsyncadd %s134, 0
          %s140 = smul.addr %s24, 4
          %s141 = sadd.s32 %s25, %s140
          %s142 = smul.addr %s141, 2
          %s143 = scalar_lea.hbm %s0, %s142
          %s144 = sshll.u32 %s143, 4
          %s145 = int_to_ptr.hbm [resolvable:$true] %s144
          %s146 = sshll.u32 %s137, 4
          %s147 = int_to_ptr.vmem [resolvable:$true] %s146
          %152 = dma.hbm_to_vmem [thread:$0]  %s145, 128, %s147, %s134, 32, 32, 2
        $region20: #{tpu_custom_call.1} parent=15 // pred_fallthru
          _
        // Predicated region
        $region21: #{tpu_custom_call.1} parent=15 // pred_check
          %p153 = pneg %p79
        $region22: #{tpu_custom_call.1} parent=15 // pred_check_branch
          %155 = sbr.rel (%p153) target = $region24
        $region23: #{tpu_custom_call.1} parent=15 // pred_region
          %s156 = sand.u32 %s69, 1
          %s157 = scalar_lea.sflag [#allocation6], %s156
          %s158 = sand.u32 %s69, 1
          %s159 = smul.addr %s158, 2
          %s160 = scalar_lea.vmem [#allocation5], %s159
          %162 = vsyncadd %s157, 0
          %s163 = sadd.s32 %s25, %s24
          %s164 = smul.addr %s163, 2
          %s165 = scalar_lea.hbm %s1, %s164
          %s167 = sshll.u32 %s165, 4
          %s168 = int_to_ptr.hbm [resolvable:$true] %s167
          %s169 = sshll.u32 %s160, 4
          %s170 = int_to_ptr.vmem [resolvable:$true] %s169
          %172 = dma.hbm_to_vmem [thread:$0]  %s168, 32, %s170, %s157
        $region24: #{tpu_custom_call.1} parent=15 // pred_fallthru
          _
      $region16: #{tpu_custom_call.1} parent=5 // pred_fallthru
        _
      %p173 = scmp.le.s32.totalorder 1, %s17
      %p174 = scmp.lt.s32.totalorder %s17, 3
      %p175 = pnand %p173, %p174
      %p176 = pneg %p175
      // Predicated region
      $region25: #{tpu_custom_call.1} parent=5 // pred_check
        _
      $region26: #{tpu_custom_call.1} parent=5 // pred_check_branch
        %178 = sbr.rel (%p175) target = $region28
      $region27: #{tpu_custom_call.1} parent=5 // pred_region
        %s179 = ssub.s32 %s17, 1
        %s180 = sand.u32 %s44, 1
        %s181 = scalar_lea.sflag [#allocation3], %s180
        %s182 = sand.u32 %s44, 1
        %s183 = smul.addr %s182, 8
        %s184 = scalar_lea.vmem [#allocation2], %s183
        // Predicated region
        $region29: #{tpu_custom_call.1} parent=27 // pred_check
          %p185 = pneg %p57
        $region30: #{tpu_custom_call.1} parent=27 // pred_check_branch
          %187 = sbr.rel (%p185) target = $region32
        $region31: #{tpu_custom_call.1} parent=27 // pred_region
          %189 = dma.done %s181, 128
        $region32: #{tpu_custom_call.1} parent=27 // pred_fallthru
          _
        %s190 = sand.u32 %s72, 1
        %s191 = scalar_lea.sflag [#allocation6], %s190
        %s192 = sand.u32 %s72, 1
        %s193 = smul.addr %s192, 2
        %s194 = scalar_lea.vmem [#allocation5], %s193
        // Predicated region
        $region33: #{tpu_custom_call.1} parent=27 // pred_check
          %p195 = pneg %p85
        $region34: #{tpu_custom_call.1} parent=27 // pred_check_branch
          %197 = sbr.rel (%p195) target = $region36
        $region35: #{tpu_custom_call.1} parent=27 // pred_region
          %199 = dma.done %s191, 32
        $region36: #{tpu_custom_call.1} parent=27 // pred_fallthru
          _
        %s200 = sand.u32 %s44, 1
        %s201 = scalar_lea.sflag [#allocation3], %s200
        %s202 = sand.u32 %s44, 1
        %s203 = smul.addr %s202, 8
        %s204 = scalar_lea.vmem [#allocation2], %s203
        %p205 = pneg %p57
        %p206 = pneg %p54
        %s207 = sand.u32 %s72, 1
        %s208 = scalar_lea.sflag [#allocation6], %s207
        %s209 = sand.u32 %s72, 1
        %s210 = smul.addr %s209, 2
        %s211 = scalar_lea.vmem [#allocation5], %s210
        %p212 = pneg %p85
        %p213 = pneg %p82
        %p214 = pneg %p111
        %p215 = pneg %p108
        %s216 = sand.u32 %s98, 1
        %s217 = scalar_lea.sflag [#allocation4], %s216
        %s218 = sand.u32 %s98, 1
        %s219 = smul.addr %s218, 2
        %s220 = scalar_lea.vmem [#allocation7], %s219
        %v221 = vld [vmem:[%s184] sm:$0x3]
        %v222 = vld [vmem:[%s184 + $0x2] sm:$0x3]
        %v223 = vld [vmem:[%s184 + $0x4] sm:$0x3]
        %v224 = vld [vmem:[%s184 + $0x6] sm:$0x3]
        %v225 = vld [vmem:[%s194] sm:$0x3]
        %vm226 = vcmask 1041408
        %v227 = vsel %vm226, %v221, -inf
        %v228 = vsel %vm226, %v222, -inf
        %v229 = vsel %vm226, %v223, -inf
        %v230 = vsel %vm226, %v224, -inf
        %v231 = vmax.f32 %v227, %v228
        %v232 = vmax.f32 %v229, %v230
        %v233 = vmax.f32 %v231, %v232
        %v234 = vsub.f32 %v221, %v233
        %v235 = vsub.f32 %v222, %v233
        %v236 = vsub.f32 %v223, %v233
        %v237 = vsub.f32 %v224, %v233
        %v238 = vmul.f32 %v234, 1.442695
        %v239 = vpow.pop %v238
        %v240 = vmul.f32 %v235, 1.442695
        %v241 = vpow.pop %v240
        %v242 = vmul.f32 %v236, 1.442695
        %v243 = vpow.pop %v242
        %v244 = vmul.f32 %v237, 1.442695
        %v245 = vpow.pop %v244
        %v246 = vsel %vm226, %v239, 0.0
        %v247 = vsel %vm226, %v241, 0.0
        %v248 = vadd.f32 %v246, %v247
        %v249 = vsel %vm226, %v243, 0.0
        %v250 = vadd.f32 %v248, %v249
        %v251 = vsel %vm226, %v245, 0.0
        %v252 = vadd.f32 %v250, %v251
        %v253 = vlog2.pop %v252
        %v254 = vmul.f32 %v253, 0.6931472
        %vm255 = vcmp.eq.s32.totalorder %v225, 0
        %vm256 = vcmp.eq.s32.totalorder %v225, 1
        %vm257 = vcmp.eq.s32.totalorder %v225, 2
        %vm258 = vcmp.eq.s32.totalorder %v225, 3
        %v259 = vsel %vm255, 1, 0
        %v260 = vsel %vm256, 1, 0
        %v261 = vsel %vm257, 1, 0
        %v262 = vsel %vm258, 1, 0
        %v263 = vcvt.s32.f32 %v259
        %v264 = vcvt.s32.f32 %v260
        %v265 = vcvt.s32.f32 %v261
        %v266 = vcvt.s32.f32 %v262
        %v267 = vmul.f32 %v263, %v234
        %v268 = vmul.f32 %v264, %v235
        %v269 = vmul.f32 %v265, %v236
        %v270 = vmul.f32 %v266, %v237
        %v271 = vsel %vm226, %v267, 0.0
        %v272 = vsel %vm226, %v268, 0.0
        %v273 = vadd.f32 %v271, %v272
        %v274 = vsel %vm226, %v269, 0.0
        %v275 = vadd.f32 %v273, %v274
        %v276 = vsel %vm226, %v270, 0.0
        %v277 = vadd.f32 %v275, %v276
        %v278 = vsub.f32 %v277, %v254
        %v279 = vmul.f32 %v278, 1.442695
        %v280 = vpow.pop %v279
        %v281 = vsub.f32 1.0, %v280
        %v282 = vmul.f32 %v281, %v281
        %v283 = vmul.f32 %v281, %v282
        %v284 = vsub.f32 0.0, %v283
        %v285 = vmul.f32 %v284, %v278
        %p286 = scmp.eq.s32.totalorder %s27, 0
        // Predicated region
        $region37: #{tpu_custom_call.1} parent=27 // pred_check
          %p287 = pneg %p286
        $region38: #{tpu_custom_call.1} parent=27 // pred_check_branch
          %289 = sbr.rel (%p287) target = $region40
        $region39: #{tpu_custom_call.1} parent=27 // pred_region
          %290 = vst [vmem:[%s220] sm:$0x3] 0.0
        $region40: #{tpu_custom_call.1} parent=27 // pred_fallthru
          _
        %v291 = vld [vmem:[%s220] sm:$0x3]
        %v292 = vadd.f32 %v291, %v285
        %293 = vst [vmem:[%s220] sm:$0x3] %v292
        %s294 = sand.u32 %s98, 1
        %s295 = scalar_lea.sflag [#allocation4], %s294
        %s296 = sand.u32 %s98, 1
        %s297 = smul.addr %s296, 2
        %s298 = scalar_lea.vmem [#allocation7], %s297
        // Predicated region
        $region41: #{tpu_custom_call.1} parent=27 // pred_check
          %p299 = pneg %p108
        $region42: #{tpu_custom_call.1} parent=27 // pred_check_branch
          %301 = sbr.rel (%p299) target = $region44
        $region43: #{tpu_custom_call.1} parent=27 // pred_region
          %303 = vsyncadd %s295, 0
          %s304 = smul.addr %s26, 2
          %s305 = scalar_lea.hbm %s2, %s304
          %s307 = sshll.u32 %s298, 4
          %s308 = int_to_ptr.vmem [resolvable:$true] %s307
          %s309 = sshll.u32 %s305, 4
          %s310 = int_to_ptr.hbm [resolvable:$true] %s309
          %312 = dma.vmem_to_hbm [thread:$0]  %s308, 32, %s310, %s295
        $region44: #{tpu_custom_call.1} parent=27 // pred_fallthru
          _
      $region28: #{tpu_custom_call.1} parent=5 // pred_fallthru
        _
      %p313 = scmp.le.s32.totalorder 2, %s17
      // Predicated region
      $region45: #{tpu_custom_call.1} parent=5 // pred_check
        %p314 = pneg %p313
      $region46: #{tpu_custom_call.1} parent=5 // pred_check_branch
        %316 = sbr.rel (%p314) target = $region48
      $region47: #{tpu_custom_call.1} parent=5 // pred_region
        %s317 = ssub.s32 %s17, 2
        // Predicated region
        $region49: #{tpu_custom_call.1} parent=47 // pred_check
          %p318 = pneg %p114
        $region50: #{tpu_custom_call.1} parent=47 // pred_check_branch
          %320 = sbr.rel (%p318) target = $region52
        $region51: #{tpu_custom_call.1} parent=47 // pred_region
          %s321 = sand.u32 %s99, 1
          %s322 = scalar_lea.sflag [#allocation4], %s321
          %s323 = sand.u32 %s99, 1
          %s324 = smul.addr %s323, 2
          %s325 = scalar_lea.vmem [#allocation7], %s324
          %327 = dma.done %s322, 32
        $region52: #{tpu_custom_call.1} parent=47 // pred_fallthru
          _
      $region48: #{tpu_custom_call.1} parent=5 // pred_fallthru
        _
    $region6: #{tpu_custom_call.1} parent=1 // loop_footer
      %s21 = sadd.s32 1, %s17
    $region7: #{tpu_custom_call.1} parent=1 // loop_footer_branch
      %16 = sbr.rel target = $region3
    $region8: #{tpu_custom_call.1} parent=1 // loop_exit
      _
    %328 = vsyncpa [#allocation3], 1
    %s329 = scalar_lea.sflag [#allocation3], 1
    %330 = vsyncpa %s329, 1
    %331 = vsyncpa [#allocation6], 1
    %s332 = scalar_lea.sflag [#allocation6], 1
    %333 = vsyncpa %s332, 1
    %334 = vsyncpa [#allocation4], 1
    %s335 = scalar_lea.sflag [#allocation4], 1
    %336 = vsyncpa %s335, 1

</llo_original>
